<compile_context>
chip_gen: v7x
topology: tpu7x:2x2x1
jax: 0.10.0
libtpu: 0.0.40
codegen_flags: <defaults>
</compile_context>

<pallas_src>
import jax
import jax.numpy as jnp
from jax import lax
from jax.experimental import pallas as pl
from jax.experimental.pallas import tpu as pltpu

INPUT_SIZE = 14
OUTPUT_SIZE = 1
HIDDEN_LAYERS = [(128, 0.4), (96, 0.4), (64, 0.3), (32, 0.3), (16, 0.0)]
LAYER_SIZES = [INPUT_SIZE] + [n for n, _ in HIDDEN_LAYERS] + [OUTPUT_SIZE]  # [14,128,96,64,32,16,1]

MAX_TB = 1024  # preferred batch tile (lane dimension); must be a multiple of 128


def _pick_tb(batch):
    """Largest tile <= MAX_TB that still yields >= 2 grid steps when the batch allows it
    (so both v7x TensorCores get work); lane-dimension floor is 128."""
    tb = MAX_TB
    while tb > 128 and batch <= tb:
        tb //= 2
    return tb


def _mlp_kernel(x_ref,
                w0, b0, w1, b1, w2, b2, w3, b3, w4, b4, w5, b5,
                o_ref):
    """Fused MLP forward on one batch tile.

    x_ref: (TB, 14) f32, batch on sublanes (exactly as stored in HBM).
    Hidden activations are (features, TB) with batch on LANES so the 1-wide output is a
    lane-dense row. w0 is f32 (128, 14); w1..w4 are bf16 (out, in); biases f32 (out, 1);
    w5 is f32 (16, 1).
    """
    # Layer 0 in full f32 (K=14 is cheap on the MXU; preserves raw-feature precision).
    # NT contraction (w0 @ x.T) lands the batch on lanes without any wrapper transpose.
    y0 = lax.dot_general(w0[...], x_ref[...],
                         dimension_numbers=(((1,), (1,)), ((), ())),
                         preferred_element_type=jnp.float32)            # (128, TB) f32
    h = jnp.maximum(y0 + b0[...], 0.0).astype(jnp.bfloat16)

    def dense_relu(h_bf16, w_ref, b_ref):
        # bf16 operands into the MXU, f32 accumulation; f32 VPU epilogue (v5e-safe),
        # then downcast so the live inter-layer activation is bf16 (half the spill bytes).
        y = jnp.dot(w_ref[...], h_bf16, preferred_element_type=jnp.float32)
        return jnp.maximum(y + b_ref[...], 0.0).astype(jnp.bfloat16)

    h = dense_relu(h, w1, b1)   # (96,  TB)
    h = dense_relu(h, w2, b2)   # (64,  TB)
    h = dense_relu(h, w3, b3)   # (32,  TB)
    h = dense_relu(h, w4, b4)   # (16,  TB)

    # Final 16 -> 1 layer: VPU broadcast-multiply + cross-sublane (XLU) reduce, producing
    # an already lane-dense (1, TB) row (no M=1/N=1 MXU pass, no masked 1-lane stores).
    logits = jnp.sum(h.astype(jnp.float32) * w5[...], axis=0, keepdims=True) + b5[...]
    # sigmoid = 1 / (1 + e^-x): exp and approx reciprocal both use the (otherwise idle) EUP.
    o_ref[...] = pl.reciprocal(1.0 + jnp.exp(-logits), approx=True).astype(o_ref.dtype)


def race_predictor_forward(x, params):
    """x: (B, 14) float32. params: list of (W, b) with W (in, out), b (1, out)."""
    B = x.shape[0]
    tb = _pick_tb(B)
    num_tiles = pl.cdiv(B, tb)
    bp = num_tiles * tb

    x_in = x.astype(jnp.float32)
    if bp != B:
        # Only a ragged batch tail gets padded; no transpose, no copy at aligned sizes.
        x_in = jnp.zeros((bp, INPUT_SIZE), jnp.float32).at[:B, :].set(x_in)

    # Kernel parameter layout: layer-0 weight f32 (out, in); hidden weights bf16 (out, in);
    # biases f32 (out, 1); final weight kept f32 as a (16, 1) column for the VPU/XLU reduce.
    flat = []
    n_layers = len(params)
    for i, (w, b) in enumerate(params):
        if i == 0:
            flat += [w.T.astype(jnp.float32), b.T.astype(jnp.float32)]    # (128, 14), (128, 1)
        elif i < n_layers - 1:
            flat += [w.T.astype(jnp.bfloat16), b.T.astype(jnp.float32)]   # (out, in), (out, 1)
        else:
            flat += [w.astype(jnp.float32), b.T.astype(jnp.float32)]      # (16, 1), (1, 1)

    in_specs = [pl.BlockSpec((tb, INPUT_SIZE), lambda i: (i, 0))]
    # Constant index maps: params are DMA'd once and stay VMEM-resident across grid steps.
    in_specs += [pl.BlockSpec(a.shape, lambda i: (0, 0)) for a in flat]

    out = pl.pallas_call(
        _mlp_kernel,
        out_shape=jax.ShapeDtypeStruct((1, bp), jnp.float32),
        grid=(num_tiles,),
        in_specs=in_specs,
        out_specs=pl.BlockSpec((1, tb), lambda i: (0, i)),
        compiler_params=pltpu.CompilerParams(
            dimension_semantics=("parallel",)),   # shards batch tiles across v7x's 2 TCs
    )(x_in, *flat)

    # Mirror PyTorch .squeeze(): (B, 1) -> (B,)
    return out[0, :B]


def init_params(key):
    """Deterministic init mimicking nn.Linear default (uniform +-1/sqrt(fan_in))."""
    params = []
    for i in range(len(LAYER_SIZES) - 1):
        fan_in, fan_out = LAYER_SIZES[i], LAYER_SIZES[i + 1]
        key, kw, kb = jax.random.split(key, 3)
        bound = 1.0 / jnp.sqrt(jnp.float32(fan_in))
        w = jax.random.uniform(kw, (fan_in, fan_out), jnp.float32, -bound, bound)
        b = jax.random.uniform(kb, (1, fan_out), jnp.float32, -bound, bound)
        params.append((w, b))
    return params


def reference_forward(x, params):
    """Pure-JAX f32 reference for correctness checking."""
    h = x
    for i, (w, b) in enumerate(params):
        h = h @ w + b
        if i < len(params) - 1:
            h = jnp.maximum(h, 0.0)
    return jnp.squeeze(jax.nn.sigmoid(h), axis=-1)


if __name__ == "__main__":
    key = jax.random.PRNGKey(0)
    key, kx = jax.random.split(key)

    B = 8
    x = jax.random.normal(kx, (B, INPUT_SIZE), jnp.float32)
    params = init_params(key)

    y = race_predictor_forward(x, params)
    y = jax.block_until_ready(y)

    y_ref = reference_forward(x, params)
    assert y.shape == (B,)
    # Tolerance relaxed vs the f32 reference: layers 1..4 run in bf16 (f32 accumulate)
    # and the sigmoid uses an approximate EUP reciprocal.
    assert jnp.allclose(y, y_ref, atol=2e-2, rtol=2e-2), (y, y_ref)

    print("KERNEL_OK")
</pallas_src>

<mosaic_0001>
module attributes {stable_mosaic.version = 11 : i64} {
  func.func @_mlp_kernel(%arg0: i32, %arg1: memref<128x14xf32, #tpu.memory_space<vmem>>, %arg2: memref<128x14xf32, #tpu.memory_space<vmem>>, %arg3: memref<128x1xf32, #tpu.memory_space<vmem>>, %arg4: memref<96x128xbf16, #tpu.memory_space<vmem>>, %arg5: memref<96x1xf32, #tpu.memory_space<vmem>>, %arg6: memref<64x96xbf16, #tpu.memory_space<vmem>>, %arg7: memref<64x1xf32, #tpu.memory_space<vmem>>, %arg8: memref<32x64xbf16, #tpu.memory_space<vmem>>, %arg9: memref<32x1xf32, #tpu.memory_space<vmem>>, %arg10: memref<16x32xbf16, #tpu.memory_space<vmem>>, %arg11: memref<16x1xf32, #tpu.memory_space<vmem>>, %arg12: memref<16x1xf32, #tpu.memory_space<vmem>>, %arg13: memref<1x1xf32, #tpu.memory_space<vmem>>, %arg14: memref<1x128xf32, #tpu.memory_space<vmem>>) attributes {dimension_semantics = [#tpu.dimension_semantics<parallel>], iteration_bounds = array<i64: 1>, scalar_prefetch = 0 : i64, scratch_operands = 0 : i64, tpu.core_type = #tpu.core_type<tc>, window_params = [{transform_indices = @transform_0, window_bounds = array<i64: 128, 14>}, {pipeline_mode = #tpu.pipeline_mode<synchronous>, transform_indices = @transform_1, window_bounds = array<i64: 128, 14>}, {pipeline_mode = #tpu.pipeline_mode<synchronous>, transform_indices = @transform_2, window_bounds = array<i64: 128, 1>}, {pipeline_mode = #tpu.pipeline_mode<synchronous>, transform_indices = @transform_3, window_bounds = array<i64: 96, 128>}, {pipeline_mode = #tpu.pipeline_mode<synchronous>, transform_indices = @transform_4, window_bounds = array<i64: 96, 1>}, {pipeline_mode = #tpu.pipeline_mode<synchronous>, transform_indices = @transform_5, window_bounds = array<i64: 64, 96>}, {pipeline_mode = #tpu.pipeline_mode<synchronous>, transform_indices = @transform_6, window_bounds = array<i64: 64, 1>}, {pipeline_mode = #tpu.pipeline_mode<synchronous>, transform_indices = @transform_7, window_bounds = array<i64: 32, 64>}, {pipeline_mode = #tpu.pipeline_mode<synchronous>, transform_indices = @transform_8, window_bounds = array<i64: 32, 1>}, {pipeline_mode = #tpu.pipeline_mode<synchronous>, transform_indices = @transform_9, window_bounds = array<i64: 16, 32>}, {pipeline_mode = #tpu.pipeline_mode<synchronous>, transform_indices = @transform_10, window_bounds = array<i64: 16, 1>}, {pipeline_mode = #tpu.pipeline_mode<synchronous>, transform_indices = @transform_11, window_bounds = array<i64: 16, 1>}, {pipeline_mode = #tpu.pipeline_mode<synchronous>, transform_indices = @transform_12, window_bounds = array<i64: 1, 1>}, {transform_indices = @transform_13, window_bounds = array<i64: 1, 128>}]} {
    %c0 = arith.constant 0 : index
    %c0_0 = arith.constant 0 : index
    %0 = vector.load %arg2[%c0, %c0_0] : memref<128x14xf32, #tpu.memory_space<vmem>>, vector<128x14xf32>
    %c0_1 = arith.constant 0 : index
    %c0_2 = arith.constant 0 : index
    %1 = vector.load %arg1[%c0_1, %c0_2] : memref<128x14xf32, #tpu.memory_space<vmem>>, vector<128x14xf32>
    %cst = arith.constant dense<0.000000e+00> : vector<128x128xf32>
    %2 = tpu.matmul %0, %1, %cst {dimension_numbers = #tpu.dot_dimension_numbers<[1], [1], [0], [0], [0, 0, 1, 0], [], []>} : vector<128x14xf32>, vector<128x14xf32>, vector<128x128xf32> -> vector<128x128xf32>
    %c0_3 = arith.constant 0 : index
    %c0_4 = arith.constant 0 : index
    %3 = vector.load %arg3[%c0_3, %c0_4] : memref<128x1xf32, #tpu.memory_space<vmem>>, vector<128x1xf32>
    %4 = vector.broadcast %3 : vector<128x1xf32> to vector<128x128xf32>
    %5 = arith.addf %2, %4 : vector<128x128xf32>
    %cst_5 = arith.constant 0.000000e+00 : f32
    %6 = vector.broadcast %cst_5 : f32 to vector<128x128xf32>
    %7 = arith.maximumf %5, %6 : vector<128x128xf32>
    %8 = arith.truncf %7 : vector<128x128xf32> to vector<128x128xbf16>
    %c0_6 = arith.constant 0 : index
    %c0_7 = arith.constant 0 : index
    %9 = vector.load %arg4[%c0_6, %c0_7] : memref<96x128xbf16, #tpu.memory_space<vmem>>, vector<96x128xbf16>
    %cst_8 = arith.constant dense<0.000000e+00> : vector<96x128xf32>
    %10 = tpu.matmul %9, %8, %cst_8 {dimension_numbers = #tpu.dot_dimension_numbers<[1], [0], [0], [1], [0, 0, 1, 1], [], []>} : vector<96x128xbf16>, vector<128x128xbf16>, vector<96x128xf32> -> vector<96x128xf32>
    %c0_9 = arith.constant 0 : index
    %c0_10 = arith.constant 0 : index
    %11 = vector.load %arg5[%c0_9, %c0_10] : memref<96x1xf32, #tpu.memory_space<vmem>>, vector<96x1xf32>
    %12 = vector.broadcast %11 : vector<96x1xf32> to vector<96x128xf32>
    %13 = arith.addf %10, %12 : vector<96x128xf32>
    %cst_11 = arith.constant 0.000000e+00 : f32
    %14 = vector.broadcast %cst_11 : f32 to vector<96x128xf32>
    %15 = arith.maximumf %13, %14 : vector<96x128xf32>
    %16 = arith.truncf %15 : vector<96x128xf32> to vector<96x128xbf16>
    %c0_12 = arith.constant 0 : index
    %c0_13 = arith.constant 0 : index
    %17 = vector.load %arg6[%c0_12, %c0_13] : memref<64x96xbf16, #tpu.memory_space<vmem>>, vector<64x96xbf16>
    %cst_14 = arith.constant dense<0.000000e+00> : vector<64x128xf32>
    %18 = tpu.matmul %17, %16, %cst_14 {dimension_numbers = #tpu.dot_dimension_numbers<[1], [0], [0], [1], [0, 0, 1, 1], [], []>} : vector<64x96xbf16>, vector<96x128xbf16>, vector<64x128xf32> -> vector<64x128xf32>
    %c0_15 = arith.constant 0 : index
    %c0_16 = arith.constant 0 : index
    %19 = vector.load %arg7[%c0_15, %c0_16] : memref<64x1xf32, #tpu.memory_space<vmem>>, vector<64x1xf32>
    %20 = vector.broadcast %19 : vector<64x1xf32> to vector<64x128xf32>
    %21 = arith.addf %18, %20 : vector<64x128xf32>
    %cst_17 = arith.constant 0.000000e+00 : f32
    %22 = vector.broadcast %cst_17 : f32 to vector<64x128xf32>
    %23 = arith.maximumf %21, %22 : vector<64x128xf32>
    %24 = arith.truncf %23 : vector<64x128xf32> to vector<64x128xbf16>
    %c0_18 = arith.constant 0 : index
    %c0_19 = arith.constant 0 : index
    %25 = vector.load %arg8[%c0_18, %c0_19] : memref<32x64xbf16, #tpu.memory_space<vmem>>, vector<32x64xbf16>
    %cst_20 = arith.constant dense<0.000000e+00> : vector<32x128xf32>
    %26 = tpu.matmul %25, %24, %cst_20 {dimension_numbers = #tpu.dot_dimension_numbers<[1], [0], [0], [1], [0, 0, 1, 1], [], []>} : vector<32x64xbf16>, vector<64x128xbf16>, vector<32x128xf32> -> vector<32x128xf32>
    %c0_21 = arith.constant 0 : index
    %c0_22 = arith.constant 0 : index
    %27 = vector.load %arg9[%c0_21, %c0_22] : memref<32x1xf32, #tpu.memory_space<vmem>>, vector<32x1xf32>
    %28 = vector.broadcast %27 : vector<32x1xf32> to vector<32x128xf32>
    %29 = arith.addf %26, %28 : vector<32x128xf32>
    %cst_23 = arith.constant 0.000000e+00 : f32
    %30 = vector.broadcast %cst_23 : f32 to vector<32x128xf32>
    %31 = arith.maximumf %29, %30 : vector<32x128xf32>
    %32 = arith.truncf %31 : vector<32x128xf32> to vector<32x128xbf16>
    %c0_24 = arith.constant 0 : index
    %c0_25 = arith.constant 0 : index
    %33 = vector.load %arg10[%c0_24, %c0_25] : memref<16x32xbf16, #tpu.memory_space<vmem>>, vector<16x32xbf16>
    %cst_26 = arith.constant dense<0.000000e+00> : vector<16x128xf32>
    %34 = tpu.matmul %33, %32, %cst_26 {dimension_numbers = #tpu.dot_dimension_numbers<[1], [0], [0], [1], [0, 0, 1, 1], [], []>} : vector<16x32xbf16>, vector<32x128xbf16>, vector<16x128xf32> -> vector<16x128xf32>
    %c0_27 = arith.constant 0 : index
    %c0_28 = arith.constant 0 : index
    %35 = vector.load %arg11[%c0_27, %c0_28] : memref<16x1xf32, #tpu.memory_space<vmem>>, vector<16x1xf32>
    %36 = vector.broadcast %35 : vector<16x1xf32> to vector<16x128xf32>
    %37 = arith.addf %34, %36 : vector<16x128xf32>
    %cst_29 = arith.constant 0.000000e+00 : f32
    %38 = vector.broadcast %cst_29 : f32 to vector<16x128xf32>
    %39 = arith.maximumf %37, %38 : vector<16x128xf32>
    %40 = arith.truncf %39 : vector<16x128xf32> to vector<16x128xbf16>
    %41 = arith.extf %40 : vector<16x128xbf16> to vector<16x128xf32>
    %c0_30 = arith.constant 0 : index
    %c0_31 = arith.constant 0 : index
    %42 = vector.load %arg12[%c0_30, %c0_31] : memref<16x1xf32, #tpu.memory_space<vmem>>, vector<16x1xf32>
    %43 = vector.broadcast %42 : vector<16x1xf32> to vector<16x128xf32>
    %44 = arith.mulf %41, %43 : vector<16x128xf32>
    %cst_32 = arith.constant dense<0.000000e+00> : vector<128xf32>
    %45 = vector.multi_reduction <add>, %44, %cst_32 [0] : vector<16x128xf32> to vector<128xf32>
    %46 = vector.shape_cast %45 : vector<128xf32> to vector<1x128xf32>
    %c0_33 = arith.constant 0 : index
    %c0_34 = arith.constant 0 : index
    %47 = vector.load %arg13[%c0_33, %c0_34] : memref<1x1xf32, #tpu.memory_space<vmem>>, vector<1x1xf32>
    %48 = vector.broadcast %47 : vector<1x1xf32> to vector<1x128xf32>
    %49 = arith.addf %46, %48 : vector<1x128xf32>
    %cst_35 = arith.constant 0.000000e+00 : f32
    %50 = vector.broadcast %cst_35 : f32 to vector<1x128xf32>
    %51 = arith.subf %50, %49 : vector<1x128xf32>
    %52 = math.exp %51 : vector<1x128xf32>
    %cst_36 = arith.constant 1.000000e+00 : f32
    %53 = vector.broadcast %cst_36 : f32 to vector<1x128xf32>
    %54 = arith.addf %53, %52 : vector<1x128xf32>
    %55 = tpu.reciprocal %54 {approx = true} : vector<1x128xf32> -> vector<1x128xf32>
    %c0_37 = arith.constant 0 : index
    %c0_38 = arith.constant 0 : index
    %56 = vector.load %arg14[%c0_37, %c0_38] : memref<1x128xf32, #tpu.memory_space<vmem>>, vector<1x128xf32>
    tpu.vector_store %arg14[%c0_37, %c0_38], %55 {strides = array<i32>} : memref<1x128xf32, #tpu.memory_space<vmem>>, vector<1x128xf32>,
    return
  }
  func.func @transform_0(%arg0: i32) -> (i32, i32) {
    %c0_i32 = arith.constant 0 : i32
    %c0_i32_0 = arith.constant 0 : i32
    return %arg0, %c0_i32 : i32, i32
  }
  func.func @transform_1(%arg0: i32) -> (i32, i32) {
    %c0_i32 = arith.constant 0 : i32
    %c0_i32_0 = arith.constant 0 : i32
    %c0_i32_1 = arith.constant 0 : i32
    return %c0_i32, %c0_i32_0 : i32, i32
  }
  func.func @transform_2(%arg0: i32) -> (i32, i32) {
    %c0_i32 = arith.constant 0 : i32
    %c0_i32_0 = arith.constant 0 : i32
    %c0_i32_1 = arith.constant 0 : i32
    return %c0_i32, %c0_i32_0 : i32, i32
  }
  func.func @transform_3(%arg0: i32) -> (i32, i32) {
    %c0_i32 = arith.constant 0 : i32
    %c0_i32_0 = arith.constant 0 : i32
    %c0_i32_1 = arith.constant 0 : i32
    return %c0_i32, %c0_i32_0 : i32, i32
  }
  func.func @transform_4(%arg0: i32) -> (i32, i32) {
    %c0_i32 = arith.constant 0 : i32
    %c0_i32_0 = arith.constant 0 : i32
    %c0_i32_1 = arith.constant 0 : i32
    return %c0_i32, %c0_i32_0 : i32, i32
  }
  func.func @transform_5(%arg0: i32) -> (i32, i32) {
    %c0_i32 = arith.constant 0 : i32
    %c0_i32_0 = arith.constant 0 : i32
    %c0_i32_1 = arith.constant 0 : i32
    return %c0_i32, %c0_i32_0 : i32, i32
  }
  func.func @transform_6(%arg0: i32) -> (i32, i32) {
    %c0_i32 = arith.constant 0 : i32
    %c0_i32_0 = arith.constant 0 : i32
    %c0_i32_1 = arith.constant 0 : i32
    return %c0_i32, %c0_i32_0 : i32, i32
  }
  func.func @transform_7(%arg0: i32) -> (i32, i32) {
    %c0_i32 = arith.constant 0 : i32
    %c0_i32_0 = arith.constant 0 : i32
    %c0_i32_1 = arith.constant 0 : i32
    return %c0_i32, %c0_i32_0 : i32, i32
  }
  func.func @transform_8(%arg0: i32) -> (i32, i32) {
    %c0_i32 = arith.constant 0 : i32
    %c0_i32_0 = arith.constant 0 : i32
    %c0_i32_1 = arith.constant 0 : i32
    return %c0_i32, %c0_i32_0 : i32, i32
  }
  func.func @transform_9(%arg0: i32) -> (i32, i32) {
    %c0_i32 = arith.constant 0 : i32
    %c0_i32_0 = arith.constant 0 : i32
    %c0_i32_1 = arith.constant 0 : i32
    return %c0_i32, %c0_i32_0 : i32, i32
  }
  func.func @transform_10(%arg0: i32) -> (i32, i32) {
    %c0_i32 = arith.constant 0 : i32
    %c0_i32_0 = arith.constant 0 : i32
    %c0_i32_1 = arith.constant 0 : i32
    return %c0_i32, %c0_i32_0 : i32, i32
  }
  func.func @transform_11(%arg0: i32) -> (i32, i32) {
    %c0_i32 = arith.constant 0 : i32
    %c0_i32_0 = arith.constant 0 : i32
    %c0_i32_1 = arith.constant 0 : i32
    return %c0_i32, %c0_i32_0 : i32, i32
  }
  func.func @transform_12(%arg0: i32) -> (i32, i32) {
    %c0_i32 = arith.constant 0 : i32
    %c0_i32_0 = arith.constant 0 : i32
    %c0_i32_1 = arith.constant 0 : i32
    return %c0_i32, %c0_i32_0 : i32, i32
  }
  func.func @transform_13(%arg0: i32) -> (i32, i32) {
    %c0_i32 = arith.constant 0 : i32
    %c0_i32_0 = arith.constant 0 : i32
    return %c0_i32, %arg0 : i32, i32
  }
}

</mosaic_0001>

<llo_original>
// kernel: tpu_custom_call.1
$region0: #{tpu_custom_call.1}
  #allocation0 [shape = 'u32[]', space=smem, size = 0x4, offset = 0x4, fixed_abs, tag = 'smem constant byte address 0x4 - core index']
  #allocation1 [shape = 'u32[144,128]{1,0:T(1,128)}', space=vmem, size = 0x12000, scoped, tag = 'internal scratch']
  #allocation2 [shape = 'f32[1,1]{1,0:T(1,128)S(1)}', space=vmem, size = 0x200, scoped, tag = 'scoped memory for tpu_custom_call.1']
  %s0 = inlined_call_operand.vmem [shape: f32[128,14], index: 0, kind: input, shape index: {}]
  %s1 = inlined_call_operand.vmem [shape: f32[128,14], index: 1, kind: input, shape index: {}]
  %s2 = inlined_call_operand.vmem [shape: f32[128,1], index: 2, kind: input, shape index: {}]
  %s3 = inlined_call_operand.vmem [shape: bf16[96,128], index: 3, kind: input, shape index: {}]
  %s4 = inlined_call_operand.vmem [shape: f32[96,1], index: 4, kind: input, shape index: {}]
  %s5 = inlined_call_operand.vmem [shape: bf16[64,96], index: 5, kind: input, shape index: {}]
  %s6 = inlined_call_operand.vmem [shape: f32[64,1], index: 6, kind: input, shape index: {}]
  %s7 = inlined_call_operand.vmem [shape: bf16[32,64], index: 7, kind: input, shape index: {}]
  %s8 = inlined_call_operand.vmem [shape: f32[32,1], index: 8, kind: input, shape index: {}]
  %s9 = inlined_call_operand.vmem [shape: bf16[16,32], index: 9, kind: input, shape index: {}]
  %s10 = inlined_call_operand.vmem [shape: f32[16,1], index: 10, kind: input, shape index: {}]
  %s11 = inlined_call_operand.vmem [shape: f32[16,1], index: 11, kind: input, shape index: {}]
  %s12 = inlined_call_operand.<no memory space> [shape: f32[1,1], index: 12, kind: input, shape index: {}]
  %s13 = inlined_call_operand.hbm [shape: f32[1,128], index: 13, kind: output, shape index: {}]
  %s14 = sld [smem:[#allocation0]]
  $region62: #{tpu_custom_call.1} parent=0
    _
  %s16 = ssub.s32 1, %s14
  %s17 = scalar_select 0, %s16, %s14
  %v18 = vstv %s12
  %19 = vst [vmem:[#allocation2] sm:$0x1] %v18
  $region1: #{tpu_custom_call.1} parent=0
    #allocation3 [shape = 'u8[512]{0}', space=vmem, size = 0x400, scoped, tag = 'output window, operand 0, single buffered']
    #allocation4 [shape = 's32[1]{0}', space=sflag, size = 0x4, scoped, tag = 'scoped memory for tpu_custom_call.1']
    %20 = vsyncpa [#allocation4], 0
    // Predicated region
    $region2: #{tpu_custom_call.1} parent=1 // pred_check
      _
    $region3: #{tpu_custom_call.1} parent=1 // pred_check_branch
      %22 = sbr.rel (0) target = $region5
    $region4: #{tpu_custom_call.1} parent=1 // pred_region
      _
    $region5: #{tpu_custom_call.1} parent=1 // pred_fallthru
      _
    // Predicated region
    $region6: #{tpu_custom_call.1} parent=1 // pred_check
      _
    $region7: #{tpu_custom_call.1} parent=1 // pred_check_branch
      %24 = sbr.rel (0) target = $region9
    $region8: #{tpu_custom_call.1} parent=1 // pred_region
      _
    $region9: #{tpu_custom_call.1} parent=1 // pred_fallthru
      _
    // Predicated region
    $region10: #{tpu_custom_call.1} parent=1 // pred_check
      _
    $region11: #{tpu_custom_call.1} parent=1 // pred_check_branch
      %26 = sbr.rel (0) target = $region13
    $region12: #{tpu_custom_call.1} parent=1 // pred_region
      _
    $region13: #{tpu_custom_call.1} parent=1 // pred_fallthru
      _
    // Predicated region
    $region14: #{tpu_custom_call.1} parent=1 // pred_check
      _
    $region15: #{tpu_custom_call.1} parent=1 // pred_check_branch
      %28 = sbr.rel (0) target = $region17
    $region16: #{tpu_custom_call.1} parent=1 // pred_region
      _
    $region17: #{tpu_custom_call.1} parent=1 // pred_fallthru
      _
    // Predicated region
    $region18: #{tpu_custom_call.1} parent=1 // pred_check
      _
    $region19: #{tpu_custom_call.1} parent=1 // pred_check_branch
      %30 = sbr.rel (0) target = $region21
    $region20: #{tpu_custom_call.1} parent=1 // pred_region
      _
    $region21: #{tpu_custom_call.1} parent=1 // pred_fallthru
      _
    // Predicated region
    $region22: #{tpu_custom_call.1} parent=1 // pred_check
      _
    $region23: #{tpu_custom_call.1} parent=1 // pred_check_branch
      %32 = sbr.rel (0) target = $region25
    $region24: #{tpu_custom_call.1} parent=1 // pred_region
      _
    $region25: #{tpu_custom_call.1} parent=1 // pred_fallthru
      _
    // Predicated region
    $region26: #{tpu_custom_call.1} parent=1 // pred_check
      _
    $region27: #{tpu_custom_call.1} parent=1 // pred_check_branch
      %34 = sbr.rel (0) target = $region29
    $region28: #{tpu_custom_call.1} parent=1 // pred_region
      _
    $region29: #{tpu_custom_call.1} parent=1 // pred_fallthru
      _
    // Predicated region
    $region30: #{tpu_custom_call.1} parent=1 // pred_check
      _
    $region31: #{tpu_custom_call.1} parent=1 // pred_check_branch
      %36 = sbr.rel (0) target = $region33
    $region32: #{tpu_custom_call.1} parent=1 // pred_region
      _
    $region33: #{tpu_custom_call.1} parent=1 // pred_fallthru
      _
    // Predicated region
    $region34: #{tpu_custom_call.1} parent=1 // pred_check
      _
    $region35: #{tpu_custom_call.1} parent=1 // pred_check_branch
      %38 = sbr.rel (0) target = $region37
    $region36: #{tpu_custom_call.1} parent=1 // pred_region
      _
    $region37: #{tpu_custom_call.1} parent=1 // pred_fallthru
      _
    // Predicated region
    $region38: #{tpu_custom_call.1} parent=1 // pred_check
      _
    $region39: #{tpu_custom_call.1} parent=1 // pred_check_branch
      %40 = sbr.rel (0) target = $region41
    $region40: #{tpu_custom_call.1} parent=1 // pred_region
      _
    $region41: #{tpu_custom_call.1} parent=1 // pred_fallthru
      _
    // Predicated region
    $region42: #{tpu_custom_call.1} parent=1 // pred_check
      _
    $region43: #{tpu_custom_call.1} parent=1 // pred_check_branch
      %42 = sbr.rel (0) target = $region45
    $region44: #{tpu_custom_call.1} parent=1 // pred_region
      _
    $region45: #{tpu_custom_call.1} parent=1 // pred_fallthru
      _
    // Predicated region
    $region46: #{tpu_custom_call.1} parent=1 // pred_check
      _
    $region47: #{tpu_custom_call.1} parent=1 // pred_check_branch
      %44 = sbr.rel (0) target = $region49
    $region48: #{tpu_custom_call.1} parent=1 // pred_region
      _
    $region49: #{tpu_custom_call.1} parent=1 // pred_fallthru
      _
    // Predicated region
    $region50: #{tpu_custom_call.1} parent=1 // pred_check
      _
    $region51: #{tpu_custom_call.1} parent=1 // pred_check_branch
      %46 = sbr.rel (0) target = $region53
    $region52: #{tpu_custom_call.1} parent=1 // pred_region
      _
    $region53: #{tpu_custom_call.1} parent=1 // pred_fallthru
      _
    %v48 = vld [vmem:[%s1] sm:$0xff]
    %v49 = vld [vmem:[%s1 + $0x8] sm:$0xff]
    %v50 = vld [vmem:[%s1 + $0x10] sm:$0xff]
    %v51 = vld [vmem:[%s1 + $0x18] sm:$0xff]
    %v52 = vld [vmem:[%s1 + $0x20] sm:$0xff]
    %v53 = vld [vmem:[%s1 + $0x28] sm:$0xff]
    %v54 = vld [vmem:[%s1 + $0x30] sm:$0xff]
    %v55 = vld [vmem:[%s1 + $0x38] sm:$0xff]
    %v56 = vld [vmem:[%s1 + $0x40] sm:$0xff]
    %v57 = vld [vmem:[%s1 + $0x48] sm:$0xff]
    %v58 = vld [vmem:[%s1 + $0x50] sm:$0xff]
    %v59 = vld [vmem:[%s1 + $0x58] sm:$0xff]
    %v60 = vld [vmem:[%s1 + $0x60] sm:$0xff]
    %v61 = vld [vmem:[%s1 + $0x68] sm:$0xff]
    %v62 = vld [vmem:[%s1 + $0x70] sm:$0xff]
    %v63 = vld [vmem:[%s1 + $0x78] sm:$0xff]
    %v64 = vld [vmem:[%s0] sm:$0xff]
    %v65 = vld [vmem:[%s0 + $0x8] sm:$0xff]
    %v66 = vld [vmem:[%s0 + $0x10] sm:$0xff]
    %v67 = vld [vmem:[%s0 + $0x18] sm:$0xff]
    %v68 = vld [vmem:[%s0 + $0x20] sm:$0xff]
    %v69 = vld [vmem:[%s0 + $0x28] sm:$0xff]
    %v70 = vld [vmem:[%s0 + $0x30] sm:$0xff]
    %v71 = vld [vmem:[%s0 + $0x38] sm:$0xff]
    %v72 = vld [vmem:[%s0 + $0x40] sm:$0xff]
    %v73 = vld [vmem:[%s0 + $0x48] sm:$0xff]
    %v74 = vld [vmem:[%s0 + $0x50] sm:$0xff]
    %v75 = vld [vmem:[%s0 + $0x58] sm:$0xff]
    %v76 = vld [vmem:[%s0 + $0x60] sm:$0xff]
    %v77 = vld [vmem:[%s0 + $0x68] sm:$0xff]
    %v78 = vld [vmem:[%s0 + $0x70] sm:$0xff]
    %v79 = vld [vmem:[%s0 + $0x78] sm:$0xff]
    %v80 = vld [vmem:[%s2] sm:$0xff]
    %v81 = vld [vmem:[%s2 + $0x8] sm:$0xff]
    %v82 = vld [vmem:[%s2 + $0x10] sm:$0xff]
    %v83 = vld [vmem:[%s2 + $0x18] sm:$0xff]
    %v84 = vld [vmem:[%s2 + $0x20] sm:$0xff]
    %v85 = vld [vmem:[%s2 + $0x28] sm:$0xff]
    %v86 = vld [vmem:[%s2 + $0x30] sm:$0xff]
    %v87 = vld [vmem:[%s2 + $0x38] sm:$0xff]
    %v88 = vld [vmem:[%s2 + $0x40] sm:$0xff]
    %v89 = vld [vmem:[%s2 + $0x48] sm:$0xff]
    %v90 = vld [vmem:[%s2 + $0x50] sm:$0xff]
    %v91 = vld [vmem:[%s2 + $0x58] sm:$0xff]
    %v92 = vld [vmem:[%s2 + $0x60] sm:$0xff]
    %v93 = vld [vmem:[%s2 + $0x68] sm:$0xff]
    %v94 = vld [vmem:[%s2 + $0x70] sm:$0xff]
    %v95 = vld [vmem:[%s2 + $0x78] sm:$0xff]
    %97 = vset.pattern.permute.xlu0 0
    %98 = vperm.xlu0 %97, %v80
    %v99 = vpop.permute.xlu0 %98
    %102 = vset.pattern.permute.xlu0 0
    %103 = vperm.xlu0 %102, %v81
    %v104 = vpop.permute.xlu0 %103
    %107 = vset.pattern.permute.xlu0 0
    %108 = vperm.xlu0 %107, %v82
    %v109 = vpop.permute.xlu0 %108
    %112 = vset.pattern.permute.xlu0 0
    %113 = vperm.xlu0 %112, %v83
    %v114 = vpop.permute.xlu0 %113
    %117 = vset.pattern.permute.xlu0 0
    %118 = vperm.xlu0 %117, %v84
    %v119 = vpop.permute.xlu0 %118
    %122 = vset.pattern.permute.xlu0 0
    %123 = vperm.xlu0 %122, %v85
    %v124 = vpop.permute.xlu0 %123
    %127 = vset.pattern.permute.xlu0 0
    %128 = vperm.xlu0 %127, %v86
    %v129 = vpop.permute.xlu0 %128
    %132 = vset.pattern.permute.xlu0 0
    %133 = vperm.xlu0 %132, %v87
    %v134 = vpop.permute.xlu0 %133
    %137 = vset.pattern.permute.xlu0 0
    %138 = vperm.xlu0 %137, %v88
    %v139 = vpop.permute.xlu0 %138
    %142 = vset.pattern.permute.xlu0 0
    %143 = vperm.xlu0 %142, %v89
    %v144 = vpop.permute.xlu0 %143
    %147 = vset.pattern.permute.xlu0 0
    %148 = vperm.xlu0 %147, %v90
    %v149 = vpop.permute.xlu0 %148
    %152 = vset.pattern.permute.xlu0 0
    %153 = vperm.xlu0 %152, %v91
    %v154 = vpop.permute.xlu0 %153
    %157 = vset.pattern.permute.xlu0 0
    %158 = vperm.xlu0 %157, %v92
    %v159 = vpop.permute.xlu0 %158
    %162 = vset.pattern.permute.xlu0 0
    %163 = vperm.xlu0 %162, %v93
    %v164 = vpop.permute.xlu0 %163
    %167 = vset.pattern.permute.xlu0 0
    %168 = vperm.xlu0 %167, %v94
    %v169 = vpop.permute.xlu0 %168
    %172 = vset.pattern.permute.xlu0 0
    %173 = vperm.xlu0 %172, %v95
    %v174 = vpop.permute.xlu0 %173
    %vm176 = vcmask 113664
    %v178 = vsel %vm176, %v48, 0
    %v181 = vsel %vm176, %v49, 0
    %v184 = vsel %vm176, %v50, 0
    %v187 = vsel %vm176, %v51, 0
    %v190 = vsel %vm176, %v52, 0
    %v193 = vsel %vm176, %v53, 0
    %v196 = vsel %vm176, %v54, 0
    %v199 = vsel %vm176, %v55, 0
    %v202 = vsel %vm176, %v56, 0
    %v205 = vsel %vm176, %v57, 0
    %v208 = vsel %vm176, %v58, 0
    %v211 = vsel %vm176, %v59, 0
    %v214 = vsel %vm176, %v60, 0
    %v217 = vsel %vm176, %v61, 0
    %v220 = vsel %vm176, %v62, 0
    %v223 = vsel %vm176, %v63, 0
    %v226 = vsel %vm176, %v64, 0
    %v229 = vsel %vm176, %v65, 0
    %v232 = vsel %vm176, %v66, 0
    %v235 = vsel %vm176, %v67, 0
    %v238 = vsel %vm176, %v68, 0
    %v241 = vsel %vm176, %v69, 0
    %v244 = vsel %vm176, %v70, 0
    %v247 = vsel %vm176, %v71, 0
    %v250 = vsel %vm176, %v72, 0
    %v253 = vsel %vm176, %v73, 0
    %v256 = vsel %vm176, %v74, 0
    %v259 = vsel %vm176, %v75, 0
    %v262 = vsel %vm176, %v76, 0
    %v265 = vsel %vm176, %v77, 0
    %v268 = vsel %vm176, %v78, 0
    %v271 = vsel %vm176, %v79, 0
    %273 = vmatprep.subr.mxu0 0.0
    %274 = vmatpush1.xpose.msra.mxu0 %v226
    %275 = vmatprep.subr.mxu0 0.0
    %276 = vmatpush1.xpose.msra.mxu0 %v229
    %277 = vmatprep.subr.mxu0 0.0
    %278 = vmatpush1.xpose.msra.mxu0 %v232
    %279 = vmatprep.subr.mxu0 0.0
    %280 = vmatpush1.xpose.msra.mxu0 %v235
    %281 = vmatprep.subr.mxu0 0.0
    %282 = vmatpush1.xpose.msra.mxu0 %v238
    %283 = vmatprep.subr.mxu0 0.0
    %284 = vmatpush1.xpose.msra.mxu0 %v241
    %285 = vmatprep.subr.mxu0 0.0
    %286 = vmatpush1.xpose.msra.mxu0 %v244
    %287 = vmatprep.subr.mxu0 0.0
    %288 = vmatpush1.xpose.msra.mxu0 %v247
    %289 = vmatprep.subr.mxu0 0.0
    %290 = vmatpush1.xpose.msra.mxu0 %v250
    %291 = vmatprep.subr.mxu0 0.0
    %292 = vmatpush1.xpose.msra.mxu0 %v253
    %293 = vmatprep.subr.mxu0 0.0
    %294 = vmatpush1.xpose.msra.mxu0 %v256
    %295 = vmatprep.subr.mxu0 0.0
    %296 = vmatpush1.xpose.msra.mxu0 %v259
    %297 = vmatprep.subr.mxu0 0.0
    %298 = vmatpush1.xpose.msra.mxu0 %v262
    %299 = vmatprep.subr.mxu0 0.0
    %300 = vmatpush1.xpose.msra.mxu0 %v265
    %301 = vmatprep.subr.mxu0 0.0
    %302 = vmatpush1.xpose.msra.mxu0 %v268
    %303 = vmatprep.subr.mxu0 0.0
    %304 = vmatpush1.xpose.msra.mxu0 %v271
    %305 = vmatprep.subr.mxu0 0.0
    %306 = vmatpush1.xpose.msra.mxu0 0.0
    %307 = vmatprep.subr.mxu0 0.0
    %308 = vmatpush1.xpose.msra.mxu0 0.0
    %309 = vmatprep.subr.mxu0 0.0
    %310 = vmatpush1.xpose.msra.mxu0 0.0
    %311 = vmatprep.subr.mxu0 0.0
    %312 = vmatpush1.xpose.msra.mxu0 0.0
    %313 = vmatprep.subr.mxu0 0.0
    %314 = vmatpush1.xpose.msra.mxu0 0.0
    %315 = vmatprep.subr.mxu0 0.0
    %316 = vmatpush1.xpose.msra.mxu0 0.0
    %317 = vmatprep.subr.mxu0 0.0
    %318 = vmatpush1.xpose.msra.mxu0 0.0
    %319 = vmatprep.subr.mxu0 0.0
    %320 = vmatpush1.xpose.msra.mxu0 0.0
    %321 = vmatprep.subr.mxu0 0.0
    %322 = vmatpush1.xpose.msra.mxu0 0.0
    %323 = vmatprep.subr.mxu0 0.0
    %324 = vmatpush1.xpose.msra.mxu0 0.0
    %325 = vmatprep.subr.mxu0 0.0
    %326 = vmatpush1.xpose.msra.mxu0 0.0
    %327 = vmatprep.subr.mxu0 0.0
    %328 = vmatpush1.xpose.msra.mxu0 0.0
    %329 = vmatprep.subr.mxu0 0.0
    %330 = vmatpush1.xpose.msra.mxu0 0.0
    %331 = vmatprep.subr.mxu0 0.0
    %332 = vmatpush1.xpose.msra.mxu0 0.0
    %333 = vmatprep.subr.mxu0 0.0
    %334 = vmatpush1.xpose.msra.mxu0 0.0
    %335 = vmatprep.subr.mxu0 0.0
    %336 = vmatpush1.xpose.msra.mxu0 0.0
    %337 = vmatprep.mubr.f32.mxu0 0.0
    %338 = vmatmul.mubr.f32.gmra.mrb[0].mxu0 %v178
    %v339 = vpop.f32.mrb[0].mxu0
    %v340 = vadd.f32 %v99, %v339
    %v341 = vpop.f32.mrb[0].mxu0
    %342 = vmatprep.mubr.f32.mxu0 0.0
    %343 = vmatmul.mubr.f32.gmra.mrb[0].mxu0 %v181
    %v344 = vpop.f32.mrb[0].mxu0
    %v345 = vadd.f32 %v104, %v344
    %v346 = vpop.f32.mrb[0].mxu0
    %347 = vmatprep.mubr.f32.mxu0 0.0
    %348 = vmatmul.mubr.f32.gmra.mrb[0].mxu0 %v184
    %v349 = vpop.f32.mrb[0].mxu0
    %v350 = vadd.f32 %v109, %v349
    %v351 = vpop.f32.mrb[0].mxu0
    %352 = vmatprep.mubr.f32.mxu0 0.0
    %353 = vmatmul.mubr.f32.gmra.mrb[0].mxu0 %v187
    %v354 = vpop.f32.mrb[0].mxu0
    %v355 = vadd.f32 %v114, %v354
    %v356 = vpop.f32.mrb[0].mxu0
    %357 = vmatprep.mubr.f32.mxu0 0.0
    %358 = vmatmul.mubr.f32.gmra.mrb[0].mxu0 %v190
    %v359 = vpop.f32.mrb[0].mxu0
    %v360 = vadd.f32 %v119, %v359
    %v361 = vpop.f32.mrb[0].mxu0
    %362 = vmatprep.mubr.f32.mxu0 0.0
    %363 = vmatmul.mubr.f32.gmra.mrb[0].mxu0 %v193
    %v364 = vpop.f32.mrb[0].mxu0
    %v365 = vadd.f32 %v124, %v364
    %v366 = vpop.f32.mrb[0].mxu0
    %367 = vmatprep.mubr.f32.mxu0 0.0
    %368 = vmatmul.mubr.f32.gmra.mrb[0].mxu0 %v196
    %v369 = vpop.f32.mrb[0].mxu0
    %v370 = vadd.f32 %v129, %v369
    %v371 = vpop.f32.mrb[0].mxu0
    %372 = vmatprep.mubr.f32.mxu0 0.0
    %373 = vmatmul.mubr.f32.gmra.mrb[0].mxu0 %v199
    %v374 = vpop.f32.mrb[0].mxu0
    %v375 = vadd.f32 %v134, %v374
    %v376 = vpop.f32.mrb[0].mxu0
    %377 = vmatprep.mubr.f32.mxu0 0.0
    %378 = vmatmul.mubr.f32.gmra.mrb[0].mxu0 %v202
    %v379 = vpop.f32.mrb[0].mxu0
    %v380 = vadd.f32 %v139, %v379
    %v381 = vpop.f32.mrb[0].mxu0
    %382 = vmatprep.mubr.f32.mxu0 0.0
    %383 = vmatmul.mubr.f32.gmra.mrb[0].mxu0 %v205
    %v384 = vpop.f32.mrb[0].mxu0
    %v385 = vadd.f32 %v144, %v384
    %v386 = vpop.f32.mrb[0].mxu0
    %387 = vmatprep.mubr.f32.mxu0 0.0
    %388 = vmatmul.mubr.f32.gmra.mrb[0].mxu0 %v208
    %v389 = vpop.f32.mrb[0].mxu0
    %v390 = vadd.f32 %v149, %v389
    %v391 = vpop.f32.mrb[0].mxu0
    %392 = vmatprep.mubr.f32.mxu0 0.0
    %393 = vmatmul.mubr.f32.gmra.mrb[0].mxu0 %v211
    %v394 = vpop.f32.mrb[0].mxu0
    %v395 = vadd.f32 %v154, %v394
    %v396 = vpop.f32.mrb[0].mxu0
    %397 = vmatprep.mubr.f32.mxu0 0.0
    %398 = vmatmul.mubr.f32.gmra.mrb[0].mxu0 %v214
    %v399 = vpop.f32.mrb[0].mxu0
    %v400 = vadd.f32 %v159, %v399
    %v401 = vpop.f32.mrb[0].mxu0
    %402 = vmatprep.mubr.f32.mxu0 0.0
    %403 = vmatmul.mubr.f32.gmra.mrb[0].mxu0 %v217
    %v404 = vpop.f32.mrb[0].mxu0
    %v405 = vadd.f32 %v164, %v404
    %v406 = vpop.f32.mrb[0].mxu0
    %407 = vmatprep.mubr.f32.mxu0 0.0
    %408 = vmatmul.mubr.f32.gmra.mrb[0].mxu0 %v220
    %v409 = vpop.f32.mrb[0].mxu0
    %v410 = vadd.f32 %v169, %v409
    %v411 = vpop.f32.mrb[0].mxu0
    %412 = vmatprep.mubr.f32.mxu0 0.0
    %413 = vmatmul.mubr.f32.gmra.mrb[0].mxu0 %v223
    %v414 = vpop.f32.mrb[0].mxu0
    %v415 = vadd.f32 %v174, %v414
    %v416 = vpop.f32.mrb[0].mxu0
    %417 = vdwg.mxu0
    %v418 = vmax.f32 %v340, 0.0
    %v419 = vmax.f32 %v345, 0.0
    %v420 = vmax.f32 %v350, 0.0
    %v421 = vmax.f32 %v355, 0.0
    %v422 = vmax.f32 %v360, 0.0
    %v423 = vmax.f32 %v365, 0.0
    %v424 = vmax.f32 %v370, 0.0
    %v425 = vmax.f32 %v375, 0.0
    %v426 = vmax.f32 %v380, 0.0
    %v427 = vmax.f32 %v385, 0.0
    %v428 = vmax.f32 %v390, 0.0
    %v429 = vmax.f32 %v395, 0.0
    %v430 = vmax.f32 %v400, 0.0
    %v431 = vmax.f32 %v405, 0.0
    %v432 = vmax.f32 %v410, 0.0
    %v433 = vmax.f32 %v415, 0.0
    %v434 = vpack.c.bf16 %v419, %v418
    %v435 = vpack.c.bf16 %v421, %v420
    %v436 = vpack.c.bf16 %v423, %v422
    %v437 = vpack.c.bf16 %v425, %v424
    %v438 = vpack.c.bf16 %v427, %v426
    %v439 = vpack.c.bf16 %v429, %v428
    %v440 = vpack.c.bf16 %v431, %v430
    %v441 = vpack.c.bf16 %v433, %v432
    %v442 = vld [vmem:[%s3] sm:$0xf]
    %v443 = vld [vmem:[%s3 + $0x4] sm:$0xf]
    %v444 = vld [vmem:[%s3 + $0x8] sm:$0xf]
    %v445 = vld [vmem:[%s3 + $0xc] sm:$0xf]
    %v446 = vld [vmem:[%s3 + $0x10] sm:$0xf]
    %v447 = vld [vmem:[%s3 + $0x14] sm:$0xf]
    %v448 = vld [vmem:[%s3 + $0x18] sm:$0xf]
    %v449 = vld [vmem:[%s3 + $0x1c] sm:$0xf]
    %v450 = vld [vmem:[%s3 + $0x20] sm:$0xf]
    %v451 = vld [vmem:[%s3 + $0x24] sm:$0xf]
    %v452 = vld [vmem:[%s3 + $0x28] sm:$0xf]
    %v453 = vld [vmem:[%s3 + $0x2c] sm:$0xf]
    %v454 = vld [vmem:[%s4] sm:$0xff]
    %v455 = vld [vmem:[%s4 + $0x8] sm:$0xff]
    %v456 = vld [vmem:[%s4 + $0x10] sm:$0xff]
    %v457 = vld [vmem:[%s4 + $0x18] sm:$0xff]
    %v458 = vld [vmem:[%s4 + $0x20] sm:$0xff]
    %v459 = vld [vmem:[%s4 + $0x28] sm:$0xff]
    %v460 = vld [vmem:[%s4 + $0x30] sm:$0xff]
    %v461 = vld [vmem:[%s4 + $0x38] sm:$0xff]
    %v462 = vld [vmem:[%s4 + $0x40] sm:$0xff]
    %v463 = vld [vmem:[%s4 + $0x48] sm:$0xff]
    %v464 = vld [vmem:[%s4 + $0x50] sm:$0xff]
    %v465 = vld [vmem:[%s4 + $0x58] sm:$0xff]
    %467 = vset.pattern.permute.xlu0 0
    %468 = vperm.xlu0 %467, %v454
    %v469 = vpop.permute.xlu0 %468
    %472 = vset.pattern.permute.xlu0 0
    %473 = vperm.xlu0 %472, %v455
    %v474 = vpop.permute.xlu0 %473
    %477 = vset.pattern.permute.xlu0 0
    %478 = vperm.xlu0 %477, %v456
    %v479 = vpop.permute.xlu0 %478
    %482 = vset.pattern.permute.xlu0 0
    %483 = vperm.xlu0 %482, %v457
    %v484 = vpop.permute.xlu0 %483
    %487 = vset.pattern.permute.xlu0 0
    %488 = vperm.xlu0 %487, %v458
    %v489 = vpop.permute.xlu0 %488
    %492 = vset.pattern.permute.xlu0 0
    %493 = vperm.xlu0 %492, %v459
    %v494 = vpop.permute.xlu0 %493
    %497 = vset.pattern.permute.xlu0 0
    %498 = vperm.xlu0 %497, %v460
    %v499 = vpop.permute.xlu0 %498
    %502 = vset.pattern.permute.xlu0 0
    %503 = vperm.xlu0 %502, %v461
    %v504 = vpop.permute.xlu0 %503
    %507 = vset.pattern.permute.xlu0 0
    %508 = vperm.xlu0 %507, %v462
    %v509 = vpop.permute.xlu0 %508
    %512 = vset.pattern.permute.xlu0 0
    %513 = vperm.xlu0 %512, %v463
    %v514 = vpop.permute.xlu0 %513
    %517 = vset.pattern.permute.xlu0 0
    %518 = vperm.xlu0 %517, %v464
    %v519 = vpop.permute.xlu0 %518
    %522 = vset.pattern.permute.xlu0 0
    %523 = vperm.xlu0 %522, %v465
    %v524 = vpop.permute.xlu0 %523
    %v538 = vunpack.c.l.b16 %v442
    %v539 = vunpack.c.l.b16 %v443
    %v540 = vunpack.c.l.b16 %v444
    %v541 = vunpack.c.l.b16 %v445
    %v542 = vunpack.c.l.b16 %v446
    %v543 = vunpack.c.l.b16 %v447
    %v544 = vunpack.c.l.b16 %v448
    %v545 = vunpack.c.l.b16 %v449
    %v546 = vunpack.c.l.b16 %v450
    %v547 = vunpack.c.l.b16 %v451
    %v548 = vunpack.c.l.b16 %v452
    %v549 = vunpack.c.l.b16 %v453
    %v550 = vpack.c.b16 %v539, %v538
    %v551 = vpack.c.b16 %v541, %v540
    %v552 = vpack.c.b16 %v543, %v542
    %v553 = vpack.c.b16 %v545, %v544
    %v554 = vpack.c.b16 %v547, %v546
    %v555 = vpack.c.b16 %v549, %v548
    %562 = vmatprep.subr.bf16.mxu0 0
    %563 = vmatpush1.bf16.msra.mxu0 %v434
    %564 = vmatprep.subr.bf16.mxu0 0
    %565 = vmatpush1.bf16.msra.mxu0 %v435
    %566 = vmatprep.subr.bf16.mxu0 0
    %567 = vmatpush1.bf16.msra.mxu0 %v436
    %568 = vmatprep.subr.bf16.mxu0 0
    %569 = vmatpush1.bf16.msra.mxu0 %v437
    %570 = vmatprep.subr.bf16.mxu0 0
    %571 = vmatpush1.bf16.msra.mxu0 %v438
    %572 = vmatprep.subr.bf16.mxu0 0
    %573 = vmatpush1.bf16.msra.mxu0 %v439
    %574 = vmatprep.subr.bf16.mxu0 0
    %575 = vmatpush1.bf16.msra.mxu0 %v440
    %576 = vmatprep.subr.bf16.mxu0 0
    %577 = vmatpush1.bf16.msra.mxu0 %v441
    %578 = vmatprep.subr.bf16.mxu0 0
    %579 = vmatpush1.bf16.msra.mxu0 0
    %580 = vmatprep.subr.bf16.mxu0 0
    %581 = vmatpush1.bf16.msra.mxu0 0
    %582 = vmatprep.subr.bf16.mxu0 0
    %583 = vmatpush1.bf16.msra.mxu0 0
    %584 = vmatprep.subr.bf16.mxu0 0
    %585 = vmatpush1.bf16.msra.mxu0 0
    %586 = vmatprep.subr.bf16.mxu0 0
    %587 = vmatpush1.bf16.msra.mxu0 0
    %588 = vmatprep.subr.bf16.mxu0 0
    %589 = vmatpush1.bf16.msra.mxu0 0
    %590 = vmatprep.subr.bf16.mxu0 0
    %591 = vmatpush1.bf16.msra.mxu0 0
    %592 = vmatprep.subr.bf16.mxu0 0
    %593 = vmatpush1.bf16.msra.mxu0 0
    %594 = vmatprep.mubr.bf16.mxu0 0
    %595 = vmatmul.mubr.bf16.gmra.mrb[0].mxu0 %v550
    %v596 = vpop.f32.mrb[0].mxu0
    %v597 = vadd.f32 %v469, %v596
    %v598 = vpop.f32.mrb[0].mxu0
    %v599 = vpop.f32.mrb[0].mxu0
    %v600 = vadd.f32 %v474, %v599
    %v601 = vpop.f32.mrb[0].mxu0
    %602 = vmatprep.mubr.bf16.mxu0 0
    %603 = vmatmul.mubr.bf16.gmra.mrb[0].mxu0 %v551
    %v604 = vpop.f32.mrb[0].mxu0
    %v605 = vadd.f32 %v479, %v604
    %v606 = vpop.f32.mrb[0].mxu0
    %v607 = vpop.f32.mrb[0].mxu0
    %v608 = vadd.f32 %v484, %v607
    %v609 = vpop.f32.mrb[0].mxu0
    %610 = vmatprep.mubr.bf16.mxu0 0
    %611 = vmatmul.mubr.bf16.gmra.mrb[0].mxu0 %v552
    %v612 = vpop.f32.mrb[0].mxu0
    %v613 = vadd.f32 %v489, %v612
    %v614 = vpop.f32.mrb[0].mxu0
    %v615 = vpop.f32.mrb[0].mxu0
    %v616 = vadd.f32 %v494, %v615
    %v617 = vpop.f32.mrb[0].mxu0
    %618 = vmatprep.mubr.bf16.mxu0 0
    %619 = vmatmul.mubr.bf16.gmra.mrb[0].mxu0 %v553
    %v620 = vpop.f32.mrb[0].mxu0
    %v621 = vadd.f32 %v499, %v620
    %v622 = vpop.f32.mrb[0].mxu0
    %v623 = vpop.f32.mrb[0].mxu0
    %v624 = vadd.f32 %v504, %v623
    %v625 = vpop.f32.mrb[0].mxu0
    %626 = vmatprep.mubr.bf16.mxu0 0
    %627 = vmatmul.mubr.bf16.gmra.mrb[0].mxu0 %v554
    %v628 = vpop.f32.mrb[0].mxu0
    %v629 = vadd.f32 %v509, %v628
    %v630 = vpop.f32.mrb[0].mxu0
    %v631 = vpop.f32.mrb[0].mxu0
    %v632 = vadd.f32 %v514, %v631
    %v633 = vpop.f32.mrb[0].mxu0
    %634 = vmatprep.mubr.bf16.mxu0 0
    %635 = vmatmul.mubr.bf16.gmra.mrb[0].mxu0 %v555
    %v636 = vpop.f32.mrb[0].mxu0
    %v637 = vadd.f32 %v519, %v636
    %v638 = vpop.f32.mrb[0].mxu0
    %v639 = vpop.f32.mrb[0].mxu0
    %v640 = vadd.f32 %v524, %v639
    %v641 = vpop.f32.mrb[0].mxu0
    %642 = vdwg.mxu0
    %v643 = vmax.f32 %v597, 0.0
    %v644 = vmax.f32 %v600, 0.0
    %v645 = vmax.f32 %v605, 0.0
    %v646 = vmax.f32 %v608, 0.0
    %v647 = vmax.f32 %v613, 0.0
    %v648 = vmax.f32 %v616, 0.0
    %v649 = vmax.f32 %v621, 0.0
    %v650 = vmax.f32 %v624, 0.0
    %v651 = vmax.f32 %v629, 0.0
    %v652 = vmax.f32 %v632, 0.0
    %v653 = vmax.f32 %v637, 0.0
    %v654 = vmax.f32 %v640, 0.0
    %v655 = vpack.c.bf16 %v644, %v643
    %v656 = vpack.c.bf16 %v646, %v645
    %v657 = vpack.c.bf16 %v648, %v647
    %v658 = vpack.c.bf16 %v650, %v649
    %v659 = vpack.c.bf16 %v652, %v651
    %v660 = vpack.c.bf16 %v654, %v653
    %v661 = vld [vmem:[%s5] sm:$0xf]
    %v662 = vld [vmem:[%s5 + $0x4] sm:$0xf]
    %v663 = vld [vmem:[%s5 + $0x8] sm:$0xf]
    %v664 = vld [vmem:[%s5 + $0xc] sm:$0xf]
    %v665 = vld [vmem:[%s5 + $0x10] sm:$0xf]
    %v666 = vld [vmem:[%s5 + $0x14] sm:$0xf]
    %v667 = vld [vmem:[%s5 + $0x18] sm:$0xf]
    %v668 = vld [vmem:[%s5 + $0x1c] sm:$0xf]
    %v669 = vld [vmem:[%s6] sm:$0xff]
    %v670 = vld [vmem:[%s6 + $0x8] sm:$0xff]
    %v671 = vld [vmem:[%s6 + $0x10] sm:$0xff]
    %v672 = vld [vmem:[%s6 + $0x18] sm:$0xff]
    %v673 = vld [vmem:[%s6 + $0x20] sm:$0xff]
    %v674 = vld [vmem:[%s6 + $0x28] sm:$0xff]
    %v675 = vld [vmem:[%s6 + $0x30] sm:$0xff]
    %v676 = vld [vmem:[%s6 + $0x38] sm:$0xff]
    %678 = vset.pattern.permute.xlu0 0
    %679 = vperm.xlu0 %678, %v669
    %v680 = vpop.permute.xlu0 %679
    %683 = vset.pattern.permute.xlu0 0
    %684 = vperm.xlu0 %683, %v670
    %v685 = vpop.permute.xlu0 %684
    %688 = vset.pattern.permute.xlu0 0
    %689 = vperm.xlu0 %688, %v671
    %v690 = vpop.permute.xlu0 %689
    %693 = vset.pattern.permute.xlu0 0
    %694 = vperm.xlu0 %693, %v672
    %v695 = vpop.permute.xlu0 %694
    %698 = vset.pattern.permute.xlu0 0
    %699 = vperm.xlu0 %698, %v673
    %v700 = vpop.permute.xlu0 %699
    %703 = vset.pattern.permute.xlu0 0
    %704 = vperm.xlu0 %703, %v674
    %v705 = vpop.permute.xlu0 %704
    %708 = vset.pattern.permute.xlu0 0
    %709 = vperm.xlu0 %708, %v675
    %v710 = vpop.permute.xlu0 %709
    %713 = vset.pattern.permute.xlu0 0
    %714 = vperm.xlu0 %713, %v676
    %v715 = vpop.permute.xlu0 %714
    %v725 = vunpack.c.l.b16 %v661
    %v726 = vunpack.c.l.b16 %v662
    %v727 = vunpack.c.l.b16 %v663
    %v728 = vunpack.c.l.b16 %v664
    %v729 = vunpack.c.l.b16 %v665
    %v730 = vunpack.c.l.b16 %v666
    %v731 = vunpack.c.l.b16 %v667
    %v732 = vunpack.c.l.b16 %v668
    %v733 = vpack.c.b16 %v726, %v725
    %v734 = vpack.c.b16 %v728, %v727
    %v735 = vpack.c.b16 %v730, %v729
    %v736 = vpack.c.b16 %v732, %v731
    %vm737 = vcmask 785408
    %v739 = vsel %vm737, %v733, 0
    %v742 = vsel %vm737, %v734, 0
    %v745 = vsel %vm737, %v735, 0
    %v748 = vsel %vm737, %v736, 0
    %750 = vmatprep.subr.bf16.mxu0 0
    %751 = vmatpush1.bf16.msra.mxu0 %v655
    %752 = vmatprep.subr.bf16.mxu0 0
    %753 = vmatpush1.bf16.msra.mxu0 %v656
    %754 = vmatprep.subr.bf16.mxu0 0
    %755 = vmatpush1.bf16.msra.mxu0 %v657
    %756 = vmatprep.subr.bf16.mxu0 0
    %757 = vmatpush1.bf16.msra.mxu0 %v658
    %758 = vmatprep.subr.bf16.mxu0 0
    %759 = vmatpush1.bf16.msra.mxu0 %v659
    %760 = vmatprep.subr.bf16.mxu0 0
    %761 = vmatpush1.bf16.msra.mxu0 %v660
    %762 = vmatprep.subr.bf16.mxu0 0
    %763 = vmatpush1.bf16.msra.mxu0 0
    %764 = vmatprep.subr.bf16.mxu0 0
    %765 = vmatpush1.bf16.msra.mxu0 0
    %766 = vmatprep.subr.bf16.mxu0 0
    %767 = vmatpush1.bf16.msra.mxu0 0
    %768 = vmatprep.subr.bf16.mxu0 0
    %769 = vmatpush1.bf16.msra.mxu0 0
    %770 = vmatprep.subr.bf16.mxu0 0
    %771 = vmatpush1.bf16.msra.mxu0 0
    %772 = vmatprep.subr.bf16.mxu0 0
    %773 = vmatpush1.bf16.msra.mxu0 0
    %774 = vmatprep.subr.bf16.mxu0 0
    %775 = vmatpush1.bf16.msra.mxu0 0
    %776 = vmatprep.subr.bf16.mxu0 0
    %777 = vmatpush1.bf16.msra.mxu0 0
    %778 = vmatprep.subr.bf16.mxu0 0
    %779 = vmatpush1.bf16.msra.mxu0 0
    %780 = vmatprep.subr.bf16.mxu0 0
    %781 = vmatpush1.bf16.msra.mxu0 0
    %782 = vmatprep.mubr.bf16.mxu0 0
    %783 = vmatmul.mubr.bf16.gmra.mrb[0].mxu0 %v739
    %v784 = vpop.f32.mrb[0].mxu0
    %v785 = vadd.f32 %v680, %v784
    %v786 = vpop.f32.mrb[0].mxu0
    %v787 = vpop.f32.mrb[0].mxu0
    %v788 = vadd.f32 %v685, %v787
    %v789 = vpop.f32.mrb[0].mxu0
    %790 = vmatprep.mubr.bf16.mxu0 0
    %791 = vmatmul.mubr.bf16.gmra.mrb[0].mxu0 %v742
    %v792 = vpop.f32.mrb[0].mxu0
    %v793 = vadd.f32 %v690, %v792
    %v794 = vpop.f32.mrb[0].mxu0
    %v795 = vpop.f32.mrb[0].mxu0
    %v796 = vadd.f32 %v695, %v795
    %v797 = vpop.f32.mrb[0].mxu0
    %798 = vmatprep.mubr.bf16.mxu0 0
    %799 = vmatmul.mubr.bf16.gmra.mrb[0].mxu0 %v745
    %v800 = vpop.f32.mrb[0].mxu0
    %v801 = vadd.f32 %v700, %v800
    %v802 = vpop.f32.mrb[0].mxu0
    %v803 = vpop.f32.mrb[0].mxu0
    %v804 = vadd.f32 %v705, %v803
    %v805 = vpop.f32.mrb[0].mxu0
    %806 = vmatprep.mubr.bf16.mxu0 0
    %807 = vmatmul.mubr.bf16.gmra.mrb[0].mxu0 %v748
    %v808 = vpop.f32.mrb[0].mxu0
    %v809 = vadd.f32 %v710, %v808
    %v810 = vpop.f32.mrb[0].mxu0
    %v811 = vpop.f32.mrb[0].mxu0
    %v812 = vadd.f32 %v715, %v811
    %v813 = vpop.f32.mrb[0].mxu0
    %814 = vdwg.mxu0
    %v815 = vmax.f32 %v785, 0.0
    %v816 = vmax.f32 %v788, 0.0
    %v817 = vmax.f32 %v793, 0.0
    %v818 = vmax.f32 %v796, 0.0
    %v819 = vmax.f32 %v801, 0.0
    %v820 = vmax.f32 %v804, 0.0
    %v821 = vmax.f32 %v809, 0.0
    %v822 = vmax.f32 %v812, 0.0
    %v823 = vpack.c.bf16 %v816, %v815
    %v824 = vpack.c.bf16 %v818, %v817
    %v825 = vpack.c.bf16 %v820, %v819
    %v826 = vpack.c.bf16 %v822, %v821
    %v827 = vld [vmem:[%s7] sm:$0xf]
    %v828 = vld [vmem:[%s7 + $0x4] sm:$0xf]
    %v829 = vld [vmem:[%s7 + $0x8] sm:$0xf]
    %v830 = vld [vmem:[%s7 + $0xc] sm:$0xf]
    %v831 = vld [vmem:[%s8] sm:$0xff]
    %v832 = vld [vmem:[%s8 + $0x8] sm:$0xff]
    %v833 = vld [vmem:[%s8 + $0x10] sm:$0xff]
    %v834 = vld [vmem:[%s8 + $0x18] sm:$0xff]
    %836 = vset.pattern.permute.xlu0 0
    %837 = vperm.xlu0 %836, %v831
    %v838 = vpop.permute.xlu0 %837
    %841 = vset.pattern.permute.xlu0 0
    %842 = vperm.xlu0 %841, %v832
    %v843 = vpop.permute.xlu0 %842
    %846 = vset.pattern.permute.xlu0 0
    %847 = vperm.xlu0 %846, %v833
    %v848 = vpop.permute.xlu0 %847
    %851 = vset.pattern.permute.xlu0 0
    %852 = vperm.xlu0 %851, %v834
    %v853 = vpop.permute.xlu0 %852
    %v859 = vunpack.c.l.b16 %v827
    %v860 = vunpack.c.l.b16 %v828
    %v861 = vunpack.c.l.b16 %v829
    %v862 = vunpack.c.l.b16 %v830
    %v863 = vpack.c.b16 %v860, %v859
    %v864 = vpack.c.b16 %v862, %v861
    %vm865 = vcmask 523264
    %v867 = vsel %vm865, %v863, 0
    %v870 = vsel %vm865, %v864, 0
    %872 = vmatprep.subr.bf16.mxu0 0
    %873 = vmatpush1.bf16.msra.mxu0 %v823
    %874 = vmatprep.subr.bf16.mxu0 0
    %875 = vmatpush1.bf16.msra.mxu0 %v824
    %876 = vmatprep.subr.bf16.mxu0 0
    %877 = vmatpush1.bf16.msra.mxu0 %v825
    %878 = vmatprep.subr.bf16.mxu0 0
    %879 = vmatpush1.bf16.msra.mxu0 %v826
    %880 = vmatprep.subr.bf16.mxu0 0
    %881 = vmatpush1.bf16.msra.mxu0 0
    %882 = vmatprep.subr.bf16.mxu0 0
    %883 = vmatpush1.bf16.msra.mxu0 0
    %884 = vmatprep.subr.bf16.mxu0 0
    %885 = vmatpush1.bf16.msra.mxu0 0
    %886 = vmatprep.subr.bf16.mxu0 0
    %887 = vmatpush1.bf16.msra.mxu0 0
    %888 = vmatprep.subr.bf16.mxu0 0
    %889 = vmatpush1.bf16.msra.mxu0 0
    %890 = vmatprep.subr.bf16.mxu0 0
    %891 = vmatpush1.bf16.msra.mxu0 0
    %892 = vmatprep.subr.bf16.mxu0 0
    %893 = vmatpush1.bf16.msra.mxu0 0
    %894 = vmatprep.subr.bf16.mxu0 0
    %895 = vmatpush1.bf16.msra.mxu0 0
    %896 = vmatprep.subr.bf16.mxu0 0
    %897 = vmatpush1.bf16.msra.mxu0 0
    %898 = vmatprep.subr.bf16.mxu0 0
    %899 = vmatpush1.bf16.msra.mxu0 0
    %900 = vmatprep.subr.bf16.mxu0 0
    %901 = vmatpush1.bf16.msra.mxu0 0
    %902 = vmatprep.subr.bf16.mxu0 0
    %903 = vmatpush1.bf16.msra.mxu0 0
    %904 = vmatprep.mubr.bf16.mxu0 0
    %905 = vmatmul.mubr.bf16.gmra.mrb[0].mxu0 %v867
    %v906 = vpop.f32.mrb[0].mxu0
    %v907 = vadd.f32 %v838, %v906
    %v908 = vpop.f32.mrb[0].mxu0
    %v909 = vpop.f32.mrb[0].mxu0
    %v910 = vadd.f32 %v843, %v909
    %v911 = vpop.f32.mrb[0].mxu0
    %912 = vmatprep.mubr.bf16.mxu0 0
    %913 = vmatmul.mubr.bf16.gmra.mrb[0].mxu0 %v870
    %v914 = vpop.f32.mrb[0].mxu0
    %v915 = vadd.f32 %v848, %v914
    %v916 = vpop.f32.mrb[0].mxu0
    %v917 = vpop.f32.mrb[0].mxu0
    %v918 = vadd.f32 %v853, %v917
    %v919 = vpop.f32.mrb[0].mxu0
    %920 = vdwg.mxu0
    %v921 = vmax.f32 %v907, 0.0
    %v922 = vmax.f32 %v910, 0.0
    %v923 = vmax.f32 %v915, 0.0
    %v924 = vmax.f32 %v918, 0.0
    %v925 = vpack.c.bf16 %v922, %v921
    %v926 = vpack.c.bf16 %v924, %v923
    %v927 = vld [vmem:[%s9] sm:$0xf]
    %v928 = vld [vmem:[%s9 + $0x4] sm:$0xf]
    %v929 = vld [vmem:[%s10] sm:$0xff]
    %v930 = vld [vmem:[%s10 + $0x8] sm:$0xff]
    %932 = vset.pattern.permute.xlu0 0
    %933 = vperm.xlu0 %932, %v929
    %v934 = vpop.permute.xlu0 %933
    %937 = vset.pattern.permute.xlu0 0
    %938 = vperm.xlu0 %937, %v930
    %v939 = vpop.permute.xlu0 %938
    %v943 = vunpack.c.l.b16 %v927
    %v944 = vunpack.c.l.b16 %v928
    %v945 = vpack.c.b16 %v944, %v943
    %vm946 = vcmask 261120
    %v948 = vsel %vm946, %v945, 0
    %950 = vmatprep.subr.bf16.mxu0 0
    %951 = vmatpush1.bf16.msra.mxu0 %v925
    %952 = vmatprep.subr.bf16.mxu0 0
    %953 = vmatpush1.bf16.msra.mxu0 %v926
    %954 = vmatprep.subr.bf16.mxu0 0
    %955 = vmatpush1.bf16.msra.mxu0 0
    %956 = vmatprep.subr.bf16.mxu0 0
    %957 = vmatpush1.bf16.msra.mxu0 0
    %958 = vmatprep.subr.bf16.mxu0 0
    %959 = vmatpush1.bf16.msra.mxu0 0
    %960 = vmatprep.subr.bf16.mxu0 0
    %961 = vmatpush1.bf16.msra.mxu0 0
    %962 = vmatprep.subr.bf16.mxu0 0
    %963 = vmatpush1.bf16.msra.mxu0 0
    %964 = vmatprep.subr.bf16.mxu0 0
    %965 = vmatpush1.bf16.msra.mxu0 0
    %966 = vmatprep.subr.bf16.mxu0 0
    %967 = vmatpush1.bf16.msra.mxu0 0
    %968 = vmatprep.subr.bf16.mxu0 0
    %969 = vmatpush1.bf16.msra.mxu0 0
    %970 = vmatprep.subr.bf16.mxu0 0
    %971 = vmatpush1.bf16.msra.mxu0 0
    %972 = vmatprep.subr.bf16.mxu0 0
    %973 = vmatpush1.bf16.msra.mxu0 0
    %974 = vmatprep.subr.bf16.mxu0 0
    %975 = vmatpush1.bf16.msra.mxu0 0
    %976 = vmatprep.subr.bf16.mxu0 0
    %977 = vmatpush1.bf16.msra.mxu0 0
    %978 = vmatprep.subr.bf16.mxu0 0
    %979 = vmatpush1.bf16.msra.mxu0 0
    %980 = vmatprep.subr.bf16.mxu0 0
    %981 = vmatpush1.bf16.msra.mxu0 0
    %982 = vmatprep.mubr.bf16.mxu0 0
    %983 = vmatmul.mubr.bf16.gmra.mrb[0].mxu0 %v948
    %v984 = vpop.f32.mrb[0].mxu0
    %v985 = vadd.f32 %v934, %v984
    %v986 = vpop.f32.mrb[0].mxu0
    %v987 = vpop.f32.mrb[0].mxu0
    %v988 = vadd.f32 %v939, %v987
    %v989 = vpop.f32.mrb[0].mxu0
    %990 = vdwg.mxu0
    %v991 = vmax.f32 %v985, 0.0
    %v992 = vmax.f32 %v988, 0.0
    %v993 = vpack.c.bf16 %v992, %v991
    %v994 = vunpack.c.l.bf16 %v993
    %v995 = vunpack.c.h.bf16 %v993
    %v996 = vld [vmem:[%s11] sm:$0xff]
    %v997 = vld [vmem:[%s11 + $0x8] sm:$0xff]
    %999 = vset.pattern.permute.xlu0 0
    %1000 = vperm.xlu0 %999, %v996
    %v1001 = vpop.permute.xlu0 %1000
    %1004 = vset.pattern.permute.xlu0 0
    %1005 = vperm.xlu0 %1004, %v997
    %v1006 = vpop.permute.xlu0 %1005
    %v1008 = vmul.f32 %v994, %v1001
    %v1009 = vmul.f32 %v995, %v1006
    %v1010 = vadd.f32 %v1008, %v1009
    %v1011 = vrot.slane %v1010, 4
    %v1012 = vadd.f32 %v1010, %v1011
    %v1013 = vrot.slane %v1012, 2
    %v1014 = vadd.f32 %v1012, %v1013
    %v1015 = vrot.slane %v1014, 1
    %v1016 = vadd.f32 %v1014, %v1015
    %v1017 = vld [vmem:[#allocation2] sm:$0x1]
    %1019 = vset.pattern.permute.xlu0 0
    %1020 = vperm.xlu0 %1019, %v1017
    %v1021 = vpop.permute.xlu0 %1020
    %v1023 = vlaneseq
    %v1024 = vshrl.u32 %v1023, 7
    %v1025 = vsub.s32 0, %v1024
    %v1026 = vrot.slane %v1021, %v1025
    %v1027 = vadd.f32 %v1016, %v1026
    %v1028 = vsub.f32 0.0, %v1027
    %v1029 = vmul.f32 %v1028, 1.442695
    %v1030 = vpow.pop %v1029
    %v1031 = vadd.f32 %v1030, 1.0
    %v1032 = vrcp.pop %v1031
    %1033 = vst [vmem:[#allocation3] sm:$0x1] %v1032
    // Predicated region
    $region54: #{tpu_custom_call.1} parent=1 // pred_check
      _
    $region55: #{tpu_custom_call.1} parent=1 // pred_check_branch
      %1035 = sbr.rel (0) target = $region57
    $region56: #{tpu_custom_call.1} parent=1 // pred_region
      %s1037 = ssub.s32 16, 16
      %1038 = vsyncadd [#allocation4], %s1037
      %s1040 = sshll.u32 [#allocation3], 4
      %s1041 = int_to_ptr.vmem [resolvable:$true] %s1040
      %1043 = dma.vmem_to_hbm [thread:$0]  %s1041, 16, %s13, [#allocation4]
    $region57: #{tpu_custom_call.1} parent=1 // pred_fallthru
      _
    // Predicated region
    $region58: #{tpu_custom_call.1} parent=1 // pred_check
      _
    $region59: #{tpu_custom_call.1} parent=1 // pred_check_branch
      %1045 = sbr.rel (0) target = $region61
    $region60: #{tpu_custom_call.1} parent=1 // pred_region
      %1046 = dma.done [#allocation4], 16
    $region61: #{tpu_custom_call.1} parent=1 // pred_fallthru
      _
    %1047 = vsyncpa [#allocation4], 1

</llo_original>
